<compile_context>
chip_gen: v7x
topology: tpu7x:2x2x1
jax: 0.10.0
libtpu: 0.0.40
codegen_flags: <defaults>
</compile_context>

<pallas_src>
import functools

import jax
import jax.numpy as jnp
from jax.experimental import pallas as pl
from jax.experimental.pallas import tpu as pltpu


def _round_up(n, m):
    return ((n + m - 1) // m) * m


# ---------------------------------------------------------------------------
# Kernel: fused MLP on one batch tile.  Weights/biases use constant index_maps
# so they are DMA'd once and stay VMEM-resident across grid steps.
# ---------------------------------------------------------------------------
def actor_kernel(x_ref, w1_ref, b1_ref, w2_ref, b2_ref, w3_ref, b3_ref, o_ref):
    # fc1 + relu : (tb, obs) @ (obs, 128)
    h = jnp.dot(x_ref[...], w1_ref[...],
                preferred_element_type=jnp.float32) + b1_ref[...]
    h = jnp.maximum(h, 0.0)

    # fc2 + relu : (tb, 128) @ (128, 64)
    h = jnp.dot(h, w2_ref[...],
                preferred_element_type=jnp.float32) + b2_ref[...]
    h = jnp.maximum(h, 0.0)

    # folded fc3@fc4@fc5 + tanh : (tb, 64) @ (64, act_pad)
    h = jnp.dot(h, w3_ref[...],
                preferred_element_type=jnp.float32) + b3_ref[...]
    o_ref[...] = jnp.tanh(h)


# ---------------------------------------------------------------------------
# One-time packing (call per parameter update, NOT per forward).
# ---------------------------------------------------------------------------
def pack_params(params, action_size):
    """Fold fc3..fc5 into one affine map and pad its output lanes to a
    multiple of 8.  Padded columns/bias lanes are zero (tanh(0)=0, sliced
    off by the wrapper), which keeps the forward semantics exact."""
    (w1, b1), (w2, b2), (w3, b3), (w4, b4), (w5, b5) = params

    w345 = w3 @ w4 @ w5                          # (64, action)
    b345 = b3 @ w4 @ w5 + b4 @ w5 + b5           # (1, action)

    act_pad = _round_up(action_size, 8)
    w345p = jnp.zeros((w345.shape[0], act_pad), jnp.float32)
    w345p = w345p.at[:, :action_size].set(w345)
    b345p = jnp.zeros((1, act_pad), jnp.float32)
    b345p = b345p.at[:, :action_size].set(b345)

    return (w1.astype(jnp.float32), b1.astype(jnp.float32),
            w2.astype(jnp.float32), b2.astype(jnp.float32),
            w345p, b345p)


def _choose_tiling(batch):
    """Batch tiling: one tile for small batches; otherwise >=2 tiles (v7x
    2-TC sharding), <=1024 rows per tile, and no overshoot past the next
    multiple of 8."""
    rb = _round_up(max(batch, 1), 8)
    if rb <= 256:
        n_tiles = 1
    else:
        n_tiles = max(2, pl.cdiv(rb, 1024))
    tb = _round_up(pl.cdiv(rb, n_tiles), 8)
    return tb, tb * n_tiles


# ---------------------------------------------------------------------------
# Forward pass (jitted).  `packed` comes from pack_params().
# ---------------------------------------------------------------------------
@functools.partial(jax.jit, static_argnames=("action_size",))
def actor_forward(x, packed, *, action_size):
    w1, b1, w2, b2, w3, b3 = packed
    batch, obs_size = x.shape
    act_pad = b3.shape[1]

    tb, padded_batch = _choose_tiling(batch)
    if padded_batch != batch:
        x = jnp.pad(x, ((0, padded_batch - batch), (0, 0)))
    n_tiles = padded_batch // tb

    out = pl.pallas_call(
        actor_kernel,
        out_shape=jax.ShapeDtypeStruct((padded_batch, act_pad), jnp.float32),
        grid_spec=pltpu.PrefetchScalarGridSpec(
            num_scalar_prefetch=0,
            grid=(n_tiles,),
            in_specs=[
                pl.BlockSpec((tb, obs_size), lambda i: (i, 0)),   # x tile
                pl.BlockSpec(w1.shape, lambda i: (0, 0)),         # fc1 W (resident)
                pl.BlockSpec(b1.shape, lambda i: (0, 0)),
                pl.BlockSpec(w2.shape, lambda i: (0, 0)),         # fc2 W (resident)
                pl.BlockSpec(b2.shape, lambda i: (0, 0)),
                pl.BlockSpec(w3.shape, lambda i: (0, 0)),         # folded fc3..5 (resident)
                pl.BlockSpec(b3.shape, lambda i: (0, 0)),
            ],
            out_specs=pl.BlockSpec((tb, act_pad), lambda i: (i, 0)),
        ),
        compiler_params=pltpu.CompilerParams(
            dimension_semantics=("parallel",)),
    )(x, w1, b1, w2, b2, w3, b3)

    return out[:batch, :action_size]


# ---------------------------------------------------------------------------
# Param init mirroring ActorNetwork.reset_parameters() and plain-JAX reference.
# ---------------------------------------------------------------------------
def init_params(key, obs_size, action_size):
    """fc1..fc4 weights ~ U(-lim, lim) with lim = 1/sqrt(128)
    (the reference uses hidden_init(self.fc1) for all of fc1..fc4);
    fc5 weights ~ U(-0.001, 0.001); biases keep PyTorch default Linear init."""
    sizes = [obs_size, 128, 64, 32, 16, action_size]
    lim_hidden = 1.0 / jnp.sqrt(128.0)

    params = []
    for i in range(5):
        d_in, d_out = sizes[i], sizes[i + 1]
        key, kw, kb = jax.random.split(key, 3)
        w_lim = lim_hidden if i < 4 else 0.001
        w = jax.random.uniform(kw, (d_in, d_out), jnp.float32,
                               minval=-w_lim, maxval=w_lim)
        b_lim = 1.0 / jnp.sqrt(float(d_in))
        b = jax.random.uniform(kb, (1, d_out), jnp.float32,
                               minval=-b_lim, maxval=b_lim)
        params.append((w, b))
    return params


def reference_forward(x, params):
    (w1, b1), (w2, b2), (w3, b3), (w4, b4), (w5, b5) = params
    h = jnp.maximum(x @ w1 + b1, 0.0)
    h = jnp.maximum(h @ w2 + b2, 0.0)
    h = h @ w3 + b3
    h = h @ w4 + b4
    h = h @ w5 + b5
    return jnp.tanh(h)


if __name__ == "__main__":
    obs_size = 24      # Unity Tennis observation size
    action_size = 2    # Unity Tennis action size

    key = jax.random.PRNGKey(0)
    key, kx1, kx2 = jax.random.split(key, 3)
    params = init_params(key, obs_size, action_size)

    # Packing / fc3..fc5 folding happens exactly once, outside the forward.
    packed = pack_params(params, action_size)

    # Small inference-style batch (single grid step, no row padding).
    x_small = jax.random.normal(kx1, (8, obs_size), jnp.float32)
    out_small = jax.block_until_ready(
        actor_forward(x_small, packed, action_size=action_size))
    ref_small = reference_forward(x_small, params)
    assert out_small.shape == (8, action_size)
    assert jnp.allclose(out_small, ref_small, atol=1e-5, rtol=1e-5), \
        "small-batch mismatch vs reference"

    # Batch exercising row padding (300 -> 304) and the 2-tile parallel grid.
    x_big = jax.random.normal(kx2, (300, obs_size), jnp.float32)
    out_big = jax.block_until_ready(
        actor_forward(x_big, packed, action_size=action_size))
    ref_big = reference_forward(x_big, params)
    assert out_big.shape == (300, action_size)
    assert jnp.allclose(out_big, ref_big, atol=1e-5, rtol=1e-5), \
        "large-batch mismatch vs reference"

    print("KERNEL_OK")
</pallas_src>

<mosaic_0001>
module attributes {stable_mosaic.version = 11 : i64} {
  func.func @actor_kernel(%arg0: i32, %arg1: memref<8x24xf32, #tpu.memory_space<vmem>>, %arg2: memref<24x128xf32, #tpu.memory_space<vmem>>, %arg3: memref<1x128xf32, #tpu.memory_space<vmem>>, %arg4: memref<128x64xf32, #tpu.memory_space<vmem>>, %arg5: memref<1x64xf32, #tpu.memory_space<vmem>>, %arg6: memref<64x8xf32, #tpu.memory_space<vmem>>, %arg7: memref<1x8xf32, #tpu.memory_space<vmem>>, %arg8: memref<8x8xf32, #tpu.memory_space<vmem>>) attributes {dimension_semantics = [#tpu.dimension_semantics<parallel>], iteration_bounds = array<i64: 1>, scalar_prefetch = 0 : i64, scratch_operands = 0 : i64, tpu.core_type = #tpu.core_type<tc>, window_params = [{transform_indices = @transform_0, window_bounds = array<i64: 8, 24>}, {pipeline_mode = #tpu.pipeline_mode<synchronous>, transform_indices = @transform_1, window_bounds = array<i64: 24, 128>}, {pipeline_mode = #tpu.pipeline_mode<synchronous>, transform_indices = @transform_2, window_bounds = array<i64: 1, 128>}, {pipeline_mode = #tpu.pipeline_mode<synchronous>, transform_indices = @transform_3, window_bounds = array<i64: 128, 64>}, {pipeline_mode = #tpu.pipeline_mode<synchronous>, transform_indices = @transform_4, window_bounds = array<i64: 1, 64>}, {pipeline_mode = #tpu.pipeline_mode<synchronous>, transform_indices = @transform_5, window_bounds = array<i64: 64, 8>}, {pipeline_mode = #tpu.pipeline_mode<synchronous>, transform_indices = @transform_6, window_bounds = array<i64: 1, 8>}, {transform_indices = @transform_7, window_bounds = array<i64: 8, 8>}]} {
    %c0 = arith.constant 0 : index
    %c0_0 = arith.constant 0 : index
    %0 = vector.load %arg1[%c0, %c0_0] : memref<8x24xf32, #tpu.memory_space<vmem>>, vector<8x24xf32>
    %c0_1 = arith.constant 0 : index
    %c0_2 = arith.constant 0 : index
    %1 = vector.load %arg2[%c0_1, %c0_2] : memref<24x128xf32, #tpu.memory_space<vmem>>, vector<24x128xf32>
    %cst = arith.constant dense<0.000000e+00> : vector<8x128xf32>
    %2 = tpu.matmul %0, %1, %cst {dimension_numbers = #tpu.dot_dimension_numbers<[1], [0], [0], [1], [0, 0, 1, 1], [], []>} : vector<8x24xf32>, vector<24x128xf32>, vector<8x128xf32> -> vector<8x128xf32>
    %c0_3 = arith.constant 0 : index
    %c0_4 = arith.constant 0 : index
    %3 = vector.load %arg3[%c0_3, %c0_4] : memref<1x128xf32, #tpu.memory_space<vmem>>, vector<1x128xf32>
    %4 = vector.broadcast %3 : vector<1x128xf32> to vector<8x128xf32>
    %5 = arith.addf %2, %4 : vector<8x128xf32>
    %cst_5 = arith.constant 0.000000e+00 : f32
    %6 = vector.broadcast %cst_5 : f32 to vector<8x128xf32>
    %7 = arith.maximumf %5, %6 : vector<8x128xf32>
    %c0_6 = arith.constant 0 : index
    %c0_7 = arith.constant 0 : index
    %8 = vector.load %arg4[%c0_6, %c0_7] : memref<128x64xf32, #tpu.memory_space<vmem>>, vector<128x64xf32>
    %cst_8 = arith.constant dense<0.000000e+00> : vector<8x64xf32>
    %9 = tpu.matmul %7, %8, %cst_8 {dimension_numbers = #tpu.dot_dimension_numbers<[1], [0], [0], [1], [0, 0, 1, 1], [], []>} : vector<8x128xf32>, vector<128x64xf32>, vector<8x64xf32> -> vector<8x64xf32>
    %c0_9 = arith.constant 0 : index
    %c0_10 = arith.constant 0 : index
    %10 = vector.load %arg5[%c0_9, %c0_10] : memref<1x64xf32, #tpu.memory_space<vmem>>, vector<1x64xf32>
    %11 = vector.broadcast %10 : vector<1x64xf32> to vector<8x64xf32>
    %12 = arith.addf %9, %11 : vector<8x64xf32>
    %cst_11 = arith.constant 0.000000e+00 : f32
    %13 = vector.broadcast %cst_11 : f32 to vector<8x64xf32>
    %14 = arith.maximumf %12, %13 : vector<8x64xf32>
    %c0_12 = arith.constant 0 : index
    %c0_13 = arith.constant 0 : index
    %15 = vector.load %arg6[%c0_12, %c0_13] : memref<64x8xf32, #tpu.memory_space<vmem>>, vector<64x8xf32>
    %cst_14 = arith.constant dense<0.000000e+00> : vector<8x8xf32>
    %16 = tpu.matmul %14, %15, %cst_14 {dimension_numbers = #tpu.dot_dimension_numbers<[1], [0], [0], [1], [0, 0, 1, 1], [], []>} : vector<8x64xf32>, vector<64x8xf32>, vector<8x8xf32> -> vector<8x8xf32>
    %c0_15 = arith.constant 0 : index
    %c0_16 = arith.constant 0 : index
    %17 = vector.load %arg7[%c0_15, %c0_16] : memref<1x8xf32, #tpu.memory_space<vmem>>, vector<1x8xf32>
    %18 = vector.broadcast %17 : vector<1x8xf32> to vector<8x8xf32>
    %19 = arith.addf %16, %18 : vector<8x8xf32>
    %20 = math.tanh %19 : vector<8x8xf32>
    %c0_17 = arith.constant 0 : index
    %c0_18 = arith.constant 0 : index
    %21 = vector.load %arg8[%c0_17, %c0_18] : memref<8x8xf32, #tpu.memory_space<vmem>>, vector<8x8xf32>
    tpu.vector_store %arg8[%c0_17, %c0_18], %20 {strides = array<i32>} : memref<8x8xf32, #tpu.memory_space<vmem>>, vector<8x8xf32>,
    return
  }
  func.func @transform_0(%arg0: i32) -> (i32, i32) {
    %c0_i32 = arith.constant 0 : i32
    %c0_i32_0 = arith.constant 0 : i32
    return %arg0, %c0_i32 : i32, i32
  }
  func.func @transform_1(%arg0: i32) -> (i32, i32) {
    %c0_i32 = arith.constant 0 : i32
    %c0_i32_0 = arith.constant 0 : i32
    %c0_i32_1 = arith.constant 0 : i32
    return %c0_i32, %c0_i32_0 : i32, i32
  }
  func.func @transform_2(%arg0: i32) -> (i32, i32) {
    %c0_i32 = arith.constant 0 : i32
    %c0_i32_0 = arith.constant 0 : i32
    %c0_i32_1 = arith.constant 0 : i32
    return %c0_i32, %c0_i32_0 : i32, i32
  }
  func.func @transform_3(%arg0: i32) -> (i32, i32) {
    %c0_i32 = arith.constant 0 : i32
    %c0_i32_0 = arith.constant 0 : i32
    %c0_i32_1 = arith.constant 0 : i32
    return %c0_i32, %c0_i32_0 : i32, i32
  }
  func.func @transform_4(%arg0: i32) -> (i32, i32) {
    %c0_i32 = arith.constant 0 : i32
    %c0_i32_0 = arith.constant 0 : i32
    %c0_i32_1 = arith.constant 0 : i32
    return %c0_i32, %c0_i32_0 : i32, i32
  }
  func.func @transform_5(%arg0: i32) -> (i32, i32) {
    %c0_i32 = arith.constant 0 : i32
    %c0_i32_0 = arith.constant 0 : i32
    %c0_i32_1 = arith.constant 0 : i32
    return %c0_i32, %c0_i32_0 : i32, i32
  }
  func.func @transform_6(%arg0: i32) -> (i32, i32) {
    %c0_i32 = arith.constant 0 : i32
    %c0_i32_0 = arith.constant 0 : i32
    %c0_i32_1 = arith.constant 0 : i32
    return %c0_i32, %c0_i32_0 : i32, i32
  }
  func.func @transform_7(%arg0: i32) -> (i32, i32) {
    %c0_i32 = arith.constant 0 : i32
    %c0_i32_0 = arith.constant 0 : i32
    return %arg0, %c0_i32 : i32, i32
  }
}

</mosaic_0001>

<llo_original>
// kernel: actor_forward.1
$region0: #{actor_forward.1}
  #allocation0 [shape = 'u32[]', space=smem, size = 0x4, offset = 0x4, fixed_abs, tag = 'smem constant byte address 0x4 - core index']
  #allocation1 [shape = 'u32[144,128]{1,0:T(1,128)}', space=vmem, size = 0x12000, scoped, tag = 'internal scratch']
  %s0 = inlined_call_operand.vmem [shape: f32[8,24], index: 0, kind: input, shape index: {}]
  %s1 = inlined_call_operand.vmem [shape: f32[24,128], index: 1, kind: input, shape index: {}]
  %s2 = inlined_call_operand.vmem [shape: f32[1,128], index: 2, kind: input, shape index: {}]
  %s3 = inlined_call_operand.vmem [shape: f32[128,64], index: 3, kind: input, shape index: {}]
  %s4 = inlined_call_operand.vmem [shape: f32[1,64], index: 4, kind: input, shape index: {}]
  %s5 = inlined_call_operand.vmem [shape: f32[64,8], index: 5, kind: input, shape index: {}]
  %s6 = inlined_call_operand.vmem [shape: f32[1,8], index: 6, kind: input, shape index: {}]
  %s7 = inlined_call_operand.vmem [shape: f32[8,8], index: 7, kind: output, shape index: {}]
  %s8 = sld [smem:[#allocation0]]
  $region38: #{actor_forward.1} parent=0
    _
  %s10 = ssub.s32 1, %s8
  %s11 = scalar_select 0, %s10, %s8
  // Predicated region
  $region2: #{actor_forward.1} parent=0 // pred_check
    _
  $region3: #{actor_forward.1} parent=0 // pred_check_branch
    %13 = sbr.rel (0) target = $region5
  $region4: #{actor_forward.1} parent=0 // pred_region
    _
  $region5: #{actor_forward.1} parent=0 // pred_fallthru
    _
  // Predicated region
  $region6: #{actor_forward.1} parent=0 // pred_check
    _
  $region7: #{actor_forward.1} parent=0 // pred_check_branch
    %15 = sbr.rel (0) target = $region9
  $region8: #{actor_forward.1} parent=0 // pred_region
    _
  $region9: #{actor_forward.1} parent=0 // pred_fallthru
    _
  // Predicated region
  $region10: #{actor_forward.1} parent=0 // pred_check
    _
  $region11: #{actor_forward.1} parent=0 // pred_check_branch
    %17 = sbr.rel (0) target = $region13
  $region12: #{actor_forward.1} parent=0 // pred_region
    _
  $region13: #{actor_forward.1} parent=0 // pred_fallthru
    _
  // Predicated region
  $region14: #{actor_forward.1} parent=0 // pred_check
    _
  $region15: #{actor_forward.1} parent=0 // pred_check_branch
    %19 = sbr.rel (0) target = $region17
  $region16: #{actor_forward.1} parent=0 // pred_region
    _
  $region17: #{actor_forward.1} parent=0 // pred_fallthru
    _
  // Predicated region
  $region18: #{actor_forward.1} parent=0 // pred_check
    _
  $region19: #{actor_forward.1} parent=0 // pred_check_branch
    %21 = sbr.rel (0) target = $region21
  $region20: #{actor_forward.1} parent=0 // pred_region
    _
  $region21: #{actor_forward.1} parent=0 // pred_fallthru
    _
  // Predicated region
  $region22: #{actor_forward.1} parent=0 // pred_check
    _
  $region23: #{actor_forward.1} parent=0 // pred_check_branch
    %23 = sbr.rel (0) target = $region25
  $region24: #{actor_forward.1} parent=0 // pred_region
    _
  $region25: #{actor_forward.1} parent=0 // pred_fallthru
    _
  // Predicated region
  $region26: #{actor_forward.1} parent=0 // pred_check
    _
  $region27: #{actor_forward.1} parent=0 // pred_check_branch
    %25 = sbr.rel (0) target = $region29
  $region28: #{actor_forward.1} parent=0 // pred_region
    _
  $region29: #{actor_forward.1} parent=0 // pred_fallthru
    _
  %v26 = vld [vmem:[%s0] sm:$0xff]
  %v27 = vld [vmem:[%s1] sm:$0xff]
  %v28 = vld [vmem:[%s1 + $0x8] sm:$0xff]
  %v29 = vld [vmem:[%s1 + $0x10] sm:$0xff]
  %v30 = vld [vmem:[%s2] sm:$0x1]
  %v32 = vlaneseq
  %v33 = vshrl.u32 %v32, 7
  %v34 = vsub.s32 0, %v33
  %v35 = vrot.slane %v30, %v34
  %vm37 = vcmask 195584
  %v39 = vsel %vm37, %v26, 0
  %41 = vmatprep.subr.mxu0 0.0
  %42 = vmatpush1.msra.mxu0 %v27
  %43 = vmatprep.subr.mxu0 0.0
  %44 = vmatpush1.msra.mxu0 %v28
  %45 = vmatprep.subr.mxu0 0.0
  %46 = vmatpush1.msra.mxu0 %v29
  %47 = vmatprep.subr.mxu0 0.0
  %48 = vmatpush1.msra.mxu0 0.0
  %49 = vmatprep.subr.mxu0 0.0
  %50 = vmatpush1.msra.mxu0 0.0
  %51 = vmatprep.subr.mxu0 0.0
  %52 = vmatpush1.msra.mxu0 0.0
  %53 = vmatprep.subr.mxu0 0.0
  %54 = vmatpush1.msra.mxu0 0.0
  %55 = vmatprep.subr.mxu0 0.0
  %56 = vmatpush1.msra.mxu0 0.0
  %57 = vmatprep.subr.mxu0 0.0
  %58 = vmatpush1.msra.mxu0 0.0
  %59 = vmatprep.subr.mxu0 0.0
  %60 = vmatpush1.msra.mxu0 0.0
  %61 = vmatprep.subr.mxu0 0.0
  %62 = vmatpush1.msra.mxu0 0.0
  %63 = vmatprep.subr.mxu0 0.0
  %64 = vmatpush1.msra.mxu0 0.0
  %65 = vmatprep.subr.mxu0 0.0
  %66 = vmatpush1.msra.mxu0 0.0
  %67 = vmatprep.subr.mxu0 0.0
  %68 = vmatpush1.msra.mxu0 0.0
  %69 = vmatprep.subr.mxu0 0.0
  %70 = vmatpush1.msra.mxu0 0.0
  %71 = vmatprep.subr.mxu0 0.0
  %72 = vmatpush1.msra.mxu0 0.0
  %73 = vmatprep.subr.mxu0 0.0
  %74 = vmatpush1.msra.mxu0 0.0
  %75 = vmatprep.subr.mxu0 0.0
  %76 = vmatpush1.msra.mxu0 0.0
  %77 = vmatprep.subr.mxu0 0.0
  %78 = vmatpush1.msra.mxu0 0.0
  %79 = vmatprep.subr.mxu0 0.0
  %80 = vmatpush1.msra.mxu0 0.0
  %81 = vmatprep.subr.mxu0 0.0
  %82 = vmatpush1.msra.mxu0 0.0
  %83 = vmatprep.subr.mxu0 0.0
  %84 = vmatpush1.msra.mxu0 0.0
  %85 = vmatprep.subr.mxu0 0.0
  %86 = vmatpush1.msra.mxu0 0.0
  %87 = vmatprep.subr.mxu0 0.0
  %88 = vmatpush1.msra.mxu0 0.0
  %89 = vmatprep.subr.mxu0 0.0
  %90 = vmatpush1.msra.mxu0 0.0
  %91 = vmatprep.subr.mxu0 0.0
  %92 = vmatpush1.msra.mxu0 0.0
  %93 = vmatprep.subr.mxu0 0.0
  %94 = vmatpush1.msra.mxu0 0.0
  %95 = vmatprep.subr.mxu0 0.0
  %96 = vmatpush1.msra.mxu0 0.0
  %97 = vmatprep.subr.mxu0 0.0
  %98 = vmatpush1.msra.mxu0 0.0
  %99 = vmatprep.subr.mxu0 0.0
  %100 = vmatpush1.msra.mxu0 0.0
  %101 = vmatprep.subr.mxu0 0.0
  %102 = vmatpush1.msra.mxu0 0.0
  %103 = vmatprep.subr.mxu0 0.0
  %104 = vmatpush1.msra.mxu0 0.0
  %105 = vmatprep.mubr.f32.mxu0 0.0
  %106 = vmatmul.mubr.f32.gmra.mrb[0].mxu0 %v39
  %v107 = vpop.f32.mrb[0].mxu0
  %v108 = vadd.f32 %v35, %v107
  %v109 = vpop.f32.mrb[0].mxu0
  %110 = vdwg.mxu0
  %v111 = vmax.f32 %v108, 0.0
  %v112 = vld [vmem:[%s3] sm:$0xff]
  %v113 = vld [vmem:[%s3 + $0x8] sm:$0xff]
  %v114 = vld [vmem:[%s3 + $0x10] sm:$0xff]
  %v115 = vld [vmem:[%s3 + $0x18] sm:$0xff]
  %v116 = vld [vmem:[%s3 + $0x20] sm:$0xff]
  %v117 = vld [vmem:[%s3 + $0x28] sm:$0xff]
  %v118 = vld [vmem:[%s3 + $0x30] sm:$0xff]
  %v119 = vld [vmem:[%s3 + $0x38] sm:$0xff]
  %v120 = vld [vmem:[%s3 + $0x40] sm:$0xff]
  %v121 = vld [vmem:[%s3 + $0x48] sm:$0xff]
  %v122 = vld [vmem:[%s3 + $0x50] sm:$0xff]
  %v123 = vld [vmem:[%s3 + $0x58] sm:$0xff]
  %v124 = vld [vmem:[%s3 + $0x60] sm:$0xff]
  %v125 = vld [vmem:[%s3 + $0x68] sm:$0xff]
  %v126 = vld [vmem:[%s3 + $0x70] sm:$0xff]
  %v127 = vld [vmem:[%s3 + $0x78] sm:$0xff]
  %v128 = vld [vmem:[%s4] sm:$0x1]
  %v130 = vlaneseq
  %v131 = vshrl.u32 %v130, 7
  %v132 = vsub.s32 0, %v131
  %v133 = vrot.slane %v128, %v132
  %135 = vmatprep.subr.mxu0 0.0
  %136 = vmatpush1.msra.mxu0 %v112
  %137 = vmatprep.subr.mxu0 0.0
  %138 = vmatpush1.msra.mxu0 %v113
  %139 = vmatprep.subr.mxu0 0.0
  %140 = vmatpush1.msra.mxu0 %v114
  %141 = vmatprep.subr.mxu0 0.0
  %142 = vmatpush1.msra.mxu0 %v115
  %143 = vmatprep.subr.mxu0 0.0
  %144 = vmatpush1.msra.mxu0 %v116
  %145 = vmatprep.subr.mxu0 0.0
  %146 = vmatpush1.msra.mxu0 %v117
  %147 = vmatprep.subr.mxu0 0.0
  %148 = vmatpush1.msra.mxu0 %v118
  %149 = vmatprep.subr.mxu0 0.0
  %150 = vmatpush1.msra.mxu0 %v119
  %151 = vmatprep.subr.mxu0 0.0
  %152 = vmatpush1.msra.mxu0 %v120
  %153 = vmatprep.subr.mxu0 0.0
  %154 = vmatpush1.msra.mxu0 %v121
  %155 = vmatprep.subr.mxu0 0.0
  %156 = vmatpush1.msra.mxu0 %v122
  %157 = vmatprep.subr.mxu0 0.0
  %158 = vmatpush1.msra.mxu0 %v123
  %159 = vmatprep.subr.mxu0 0.0
  %160 = vmatpush1.msra.mxu0 %v124
  %161 = vmatprep.subr.mxu0 0.0
  %162 = vmatpush1.msra.mxu0 %v125
  %163 = vmatprep.subr.mxu0 0.0
  %164 = vmatpush1.msra.mxu0 %v126
  %165 = vmatprep.subr.mxu0 0.0
  %166 = vmatpush1.msra.mxu0 %v127
  %167 = vmatprep.subr.mxu0 0.0
  %168 = vmatpush1.msra.mxu0 0.0
  %169 = vmatprep.subr.mxu0 0.0
  %170 = vmatpush1.msra.mxu0 0.0
  %171 = vmatprep.subr.mxu0 0.0
  %172 = vmatpush1.msra.mxu0 0.0
  %173 = vmatprep.subr.mxu0 0.0
  %174 = vmatpush1.msra.mxu0 0.0
  %175 = vmatprep.subr.mxu0 0.0
  %176 = vmatpush1.msra.mxu0 0.0
  %177 = vmatprep.subr.mxu0 0.0
  %178 = vmatpush1.msra.mxu0 0.0
  %179 = vmatprep.subr.mxu0 0.0
  %180 = vmatpush1.msra.mxu0 0.0
  %181 = vmatprep.subr.mxu0 0.0
  %182 = vmatpush1.msra.mxu0 0.0
  %183 = vmatprep.subr.mxu0 0.0
  %184 = vmatpush1.msra.mxu0 0.0
  %185 = vmatprep.subr.mxu0 0.0
  %186 = vmatpush1.msra.mxu0 0.0
  %187 = vmatprep.subr.mxu0 0.0
  %188 = vmatpush1.msra.mxu0 0.0
  %189 = vmatprep.subr.mxu0 0.0
  %190 = vmatpush1.msra.mxu0 0.0
  %191 = vmatprep.subr.mxu0 0.0
  %192 = vmatpush1.msra.mxu0 0.0
  %193 = vmatprep.subr.mxu0 0.0
  %194 = vmatpush1.msra.mxu0 0.0
  %195 = vmatprep.subr.mxu0 0.0
  %196 = vmatpush1.msra.mxu0 0.0
  %197 = vmatprep.subr.mxu0 0.0
  %198 = vmatpush1.msra.mxu0 0.0
  %199 = vmatprep.mubr.f32.mxu0 0.0
  %200 = vmatmul.mubr.f32.gmra.mrb[0].mxu0 %v111
  %v201 = vpop.f32.mrb[0].mxu0
  %v202 = vadd.f32 %v133, %v201
  %v203 = vpop.f32.mrb[0].mxu0
  %204 = vdwg.mxu0
  %v205 = vmax.f32 %v202, 0.0
  %v206 = vld [vmem:[%s5] sm:$0xff]
  %v207 = vld [vmem:[%s5 + $0x8] sm:$0xff]
  %v208 = vld [vmem:[%s5 + $0x10] sm:$0xff]
  %v209 = vld [vmem:[%s5 + $0x18] sm:$0xff]
  %v210 = vld [vmem:[%s5 + $0x20] sm:$0xff]
  %v211 = vld [vmem:[%s5 + $0x28] sm:$0xff]
  %v212 = vld [vmem:[%s5 + $0x30] sm:$0xff]
  %v213 = vld [vmem:[%s5 + $0x38] sm:$0xff]
  %v214 = vld [vmem:[%s6] sm:$0x1]
  %v216 = vlaneseq
  %v217 = vshrl.u32 %v216, 7
  %v218 = vsub.s32 0, %v217
  %v219 = vrot.slane %v214, %v218
  %vm221 = vcmask 523264
  %v223 = vsel %vm221, %v205, 0
  %225 = vmatprep.subr.mxu0 0.0
  %226 = vmatpush1.msra.mxu0 %v206
  %227 = vmatprep.subr.mxu0 0.0
  %228 = vmatpush1.msra.mxu0 %v207
  %229 = vmatprep.subr.mxu0 0.0
  %230 = vmatpush1.msra.mxu0 %v208
  %231 = vmatprep.subr.mxu0 0.0
  %232 = vmatpush1.msra.mxu0 %v209
  %233 = vmatprep.subr.mxu0 0.0
  %234 = vmatpush1.msra.mxu0 %v210
  %235 = vmatprep.subr.mxu0 0.0
  %236 = vmatpush1.msra.mxu0 %v211
  %237 = vmatprep.subr.mxu0 0.0
  %238 = vmatpush1.msra.mxu0 %v212
  %239 = vmatprep.subr.mxu0 0.0
  %240 = vmatpush1.msra.mxu0 %v213
  %241 = vmatprep.subr.mxu0 0.0
  %242 = vmatpush1.msra.mxu0 0.0
  %243 = vmatprep.subr.mxu0 0.0
  %244 = vmatpush1.msra.mxu0 0.0
  %245 = vmatprep.subr.mxu0 0.0
  %246 = vmatpush1.msra.mxu0 0.0
  %247 = vmatprep.subr.mxu0 0.0
  %248 = vmatpush1.msra.mxu0 0.0
  %249 = vmatprep.subr.mxu0 0.0
  %250 = vmatpush1.msra.mxu0 0.0
  %251 = vmatprep.subr.mxu0 0.0
  %252 = vmatpush1.msra.mxu0 0.0
  %253 = vmatprep.subr.mxu0 0.0
  %254 = vmatpush1.msra.mxu0 0.0
  %255 = vmatprep.subr.mxu0 0.0
  %256 = vmatpush1.msra.mxu0 0.0
  %257 = vmatprep.subr.mxu0 0.0
  %258 = vmatpush1.msra.mxu0 0.0
  %259 = vmatprep.subr.mxu0 0.0
  %260 = vmatpush1.msra.mxu0 0.0
  %261 = vmatprep.subr.mxu0 0.0
  %262 = vmatpush1.msra.mxu0 0.0
  %263 = vmatprep.subr.mxu0 0.0
  %264 = vmatpush1.msra.mxu0 0.0
  %265 = vmatprep.subr.mxu0 0.0
  %266 = vmatpush1.msra.mxu0 0.0
  %267 = vmatprep.subr.mxu0 0.0
  %268 = vmatpush1.msra.mxu0 0.0
  %269 = vmatprep.subr.mxu0 0.0
  %270 = vmatpush1.msra.mxu0 0.0
  %271 = vmatprep.subr.mxu0 0.0
  %272 = vmatpush1.msra.mxu0 0.0
  %273 = vmatprep.subr.mxu0 0.0
  %274 = vmatpush1.msra.mxu0 0.0
  %275 = vmatprep.subr.mxu0 0.0
  %276 = vmatpush1.msra.mxu0 0.0
  %277 = vmatprep.subr.mxu0 0.0
  %278 = vmatpush1.msra.mxu0 0.0
  %279 = vmatprep.subr.mxu0 0.0
  %280 = vmatpush1.msra.mxu0 0.0
  %281 = vmatprep.subr.mxu0 0.0
  %282 = vmatpush1.msra.mxu0 0.0
  %283 = vmatprep.subr.mxu0 0.0
  %284 = vmatpush1.msra.mxu0 0.0
  %285 = vmatprep.subr.mxu0 0.0
  %286 = vmatpush1.msra.mxu0 0.0
  %287 = vmatprep.subr.mxu0 0.0
  %288 = vmatpush1.msra.mxu0 0.0
  %289 = vmatprep.mubr.f32.mxu0 0.0
  %290 = vmatmul.mubr.f32.gmra.mrb[0].mxu0 %v223
  %v291 = vpop.f32.mrb[0].mxu0
  %v292 = vadd.f32 %v219, %v291
  %v293 = vpop.f32.mrb[0].mxu0
  %294 = vdwg.mxu0
  %v295 = vtanh.pop %v292
  %vm296 = vcmask 64512
  %297 = vst.msk [vmem:[%s7] sm:$0xff] %vm296, %v295
  // Predicated region
  $region30: #{actor_forward.1} parent=0 // pred_check
    _
  $region31: #{actor_forward.1} parent=0 // pred_check_branch
    %299 = sbr.rel (0) target = $region33
  $region32: #{actor_forward.1} parent=0 // pred_region
    _
  $region33: #{actor_forward.1} parent=0 // pred_fallthru
    _
  // Predicated region
  $region34: #{actor_forward.1} parent=0 // pred_check
    _
  $region35: #{actor_forward.1} parent=0 // pred_check_branch
    %301 = sbr.rel (0) target = $region37
  $region36: #{actor_forward.1} parent=0 // pred_region
    _
  $region37: #{actor_forward.1} parent=0 // pred_fallthru
    _

</llo_original>
